<compile_context>
chip_gen: v7x
topology: tpu7x:2x2x1
jax: 0.10.0
libtpu: 0.0.40
codegen_flags: <defaults>
</compile_context>

<pallas_src>
import jax
import jax.numpy as jnp
from jax.experimental import pallas as pl
from jax.experimental.pallas import tpu as pltpu


# ----------------------------------------------------------------------------
# Optional identity-copy kernel: one HBM -> HBM DMA (no VMEM staging)
# ----------------------------------------------------------------------------

def _dma_copy_kernel(src_hbm, dst_hbm, sem):
    # Single whole-buffer async DMA; start + wait inside the kernel.
    cp = pltpu.make_async_copy(src_hbm, dst_hbm, sem)
    cp.start()
    cp.wait()


def materialized_copy(x: jax.Array) -> jax.Array:
    """Return a freshly materialized copy of `x` via a single HBM->HBM DMA."""
    if x.size == 0:
        # Nothing to copy; keep shape/dtype.
        return jnp.reshape(x, x.shape)

    orig_shape = x.shape
    # 0-D scalars: give the DMA a 1-D view, restore the shape afterwards.
    xk = x.reshape((1,)) if x.ndim == 0 else x
    nbytes = xk.size * xk.dtype.itemsize

    y = pl.pallas_call(
        _dma_copy_kernel,
        out_shape=jax.ShapeDtypeStruct(xk.shape, xk.dtype),
        in_specs=[pl.BlockSpec(memory_space=pl.ANY)],
        out_specs=pl.BlockSpec(memory_space=pl.ANY),
        scratch_shapes=[pltpu.SemaphoreType.DMA(())],
        # Pure memcpy: 0 flops, bytes = read + write.
        cost_estimate=pl.CostEstimate(
            flops=0, transcendentals=0, bytes_accessed=2 * nbytes),
    )(xk)
    return y.reshape(orig_shape)


# ----------------------------------------------------------------------------
# GetArg layer
# ----------------------------------------------------------------------------

class GetArg:
    """Mirror of refiners.fluxion.layers.basics.GetArg.

    Returns the index-th tensor of the input arguments. This is a pure
    selection (metadata-only) operation, so by default no kernel runs and the
    exact input array object is returned — matching torch's
    `id(inputs[index]) == id(output)` contract with zero HBM traffic.

    Pass materialize=True to force a distinct output buffer via a single
    HBM->HBM DMA Pallas kernel.
    """

    def __init__(self, index: int, materialize: bool = False) -> None:
        self.index = index
        self.materialize = materialize

    def __call__(self, *args: jax.Array) -> jax.Array:
        x = args[self.index]          # negative indices behave like Python indexing
        if not self.materialize:
            return x                  # zero-copy selection (the faithful translation)
        return materialized_copy(x)


if __name__ == "__main__":
    key = jax.random.PRNGKey(0)
    k1, k2, k3, k4, k5 = jax.random.split(key, 5)

    inputs = (
        jax.random.normal(k1, (2, 4, 16, 16), dtype=jnp.float32),
        jax.random.normal(k2, (2, 8, 32), dtype=jnp.float32),
        jax.random.normal(k3, (8, 32), dtype=jnp.float32),
    )

    # 1) Default (faithful) path: pure selection, same array object, no kernel.
    get_arg = GetArg(1)
    y = get_arg(*inputs)
    assert y is inputs[1]                       # matches torch's id-identity contract
    jax.block_until_ready(y)
    assert y.shape == (2, 8, 32)
    assert jnp.array_equal(y, inputs[1])

    # 2) Negative index works like Python indexing on *args.
    y_last = GetArg(-1)(*inputs)
    assert y_last is inputs[-1]
    jax.block_until_ready(y_last)

    # 3) Materializing path: exercises the HBM->HBM DMA identity-copy kernel.
    y_copy = jax.block_until_ready(GetArg(0, materialize=True)(*inputs))
    assert y_copy.shape == inputs[0].shape and y_copy.dtype == inputs[0].dtype
    assert y_copy is not inputs[0]
    assert jnp.array_equal(y_copy, inputs[0])

    y_copy2 = jax.block_until_ready(GetArg(2, materialize=True)(*inputs))
    assert jnp.array_equal(y_copy2, inputs[2])

    # 4) Awkward (non-128-multiple) shape, like the torch example's (10, 10):
    #    the HBM->HBM DMA needs no lane-dense reshape or padding.
    x_awk = jax.random.normal(k4, (10, 10), dtype=jnp.float32)
    y_awk = jax.block_until_ready(materialized_copy(x_awk))
    assert y_awk.shape == x_awk.shape
    assert jnp.array_equal(y_awk, x_awk)

    # 5) Different dtype (bf16) through the same DMA copy path.
    x_bf16 = jax.random.normal(k5, (4, 16, 32)).astype(jnp.bfloat16)
    y_bf16 = jax.block_until_ready(materialized_copy(x_bf16))
    assert y_bf16.dtype == jnp.bfloat16
    assert jnp.array_equal(y_bf16, x_bf16)

    print("KERNEL_OK")
</pallas_src>

<mosaic_0001>
module attributes {stable_mosaic.version = 11 : i64} {
  func.func @_dma_copy_kernel(%arg0: memref<2x4x16x16xf32, #tpu.memory_space<any>>, %arg1: memref<2x4x16x16xf32, #tpu.memory_space<any>>, %arg2: memref<!tpu.dma_semaphore, #tpu.memory_space<semaphore_mem>>) attributes {dimension_semantics = [], scalar_prefetch = 0 : i64, scratch_operands = 1 : i64, tpu.core_type = #tpu.core_type<tc>} {
    tpu.enqueue_dma source(%arg0 : memref<2x4x16x16xf32, #tpu.memory_space<any>>) target(%arg1 : memref<2x4x16x16xf32, #tpu.memory_space<any>>) target_semaphore(%arg2 : memref<!tpu.dma_semaphore, #tpu.memory_space<semaphore_mem>>)
    tpu.wait_dma2 semaphore(%arg2 : memref<!tpu.dma_semaphore, #tpu.memory_space<semaphore_mem>>) src(%arg0 : memref<2x4x16x16xf32, #tpu.memory_space<any>>) dst(%arg1 : memref<2x4x16x16xf32, #tpu.memory_space<any>>)
    return
  }
}

</mosaic_0001>

<llo_original>
// kernel: tpu_custom_call.1
$region0: #{tpu_custom_call.1}
  #allocation0 [shape = 'u32[]', space=smem, size = 0x4, offset = 0x4, fixed_abs, tag = 'smem constant byte address 0x4 - core index']
  #allocation1 [shape = 'u32[144,128]{1,0:T(1,128)}', space=vmem, size = 0x12000, scoped, tag = 'internal scratch']
  #allocation2 [shape = 's32[1]{0}', space=sflag, size = 0x4, scoped, tag = 'scratch operand']
  #allocation3 [shape = 's32[]', space=sflag, size = 0x4, offset = 0, fixed_abs, tag = 'sflag constant byte address 0x0 - dummy sync flag']
  #allocation4 [shape = 'u32[0]{0}', space=smem, size = 0, offset = 0, fixed_abs, tag = 'smem constant byte address 0x0 - null']
  %s0 = inlined_call_operand.hbm [shape: f32[2,4,16,16], index: 0, kind: input, shape index: {}]
  %s1 = inlined_call_operand.hbm [shape: f32[2,4,16,16], index: 1, kind: output, shape index: {}]
  %s2 = sld [smem:[#allocation0]]
  $region2: #{tpu_custom_call.1} parent=0
    _
  %s4 = ssub.s32 1, %s2
  %s5 = scalar_select 0, %s4, %s2
  %s7 = sshll.u32 1, 14
  %s8 = sxor.u32 4294967295, %s7
  %s11 = sshll.u32 3, 24
  %s12 = sxor.u32 4294967295, %s11
  %s13 = sand.u32 0, %s12
  %s15 = sor.u32 %s13, 0
  %18 = dma.general %s0, 2048, %s1, [#allocation2], [#allocation3], [#allocation4], %s15, 0
  %s19 = smul.u32 2, 4
  %s20 = smul.u32 %s19, 16
  %s21 = smul.u32 %s20, 1
  %s22 = sshll.u32 %s21, 4
  %23 = dma.done [#allocation2], %s22
  %24 = vsyncmov [#allocation2]
  %s25 = vpop.sfrf %24
  %p26 = scmp.eq.s32.totalorder %s25, 0
  %p27 = pneg %p26
  %29 = shalt.err (%p27)

</llo_original>
